<compile_context>
chip_gen: v6e
topology: v6e:2x2x1
jax: 0.10.0
libtpu: 0.0.40
codegen_flags: <defaults>
</compile_context>

<pallas_src>
import jax
import jax.numpy as jnp
from jax.experimental import pallas as pl
from jax.experimental.pallas import tpu as pltpu


def _h_swish_kernel(x_ref, o_ref):
    x = x_ref[...]
    hs = jnp.clip(x + 3.0, 0.0, 6.0) / 6.0     # h_sigmoid, input dtype
    o_ref[...] = (x * hs).astype(o_ref.dtype)


# Large lane widths first: lane-dense output is the biggest single lever.
_LANE_CANDIDATES = (2048, 1024, 512, 256, 128)


def _device_tuning():
    """Per-generation (target_block_bytes, vmem_limit_bytes-or-None)."""
    try:
        kind = jax.devices()[0].device_kind.lower()
    except Exception:
        return 2 * 1024 * 1024, None
    if "v7" in kind or "tpu7" in kind:
        # 2 arrays x 2 buffers x 8 MiB = 32 MiB -> raise scoped VMEM (64 MiB phys/TC).
        return 8 * 1024 * 1024, 48 * 1024 * 1024
    if "v6" in kind:
        # 2 x 2 x 4 MiB = 16 MiB, under the 32 MiB scoped default.
        return 4 * 1024 * 1024, None
    # v5e (16 MiB scoped default) and anything unknown: stay at 2 MiB blocks.
    return 2 * 1024 * 1024, None


def _prefer_divisor(rows, br, sub):
    """Prefer a nearby block-row count (multiple of `sub`) dividing rows exactly,
    removing the masked tail block; never shrink below br // 2."""
    if rows % br == 0:
        return br
    lo = max(sub, br // 2)
    c = br - sub
    while c >= lo:
        if rows % c == 0:
            return c
        c -= sub
    return br


def h_swish(x: jax.Array) -> jax.Array:
    """Elementwise hard-swish; accepts any shape / float dtype."""
    orig_shape = x.shape
    size = x.size
    if size == 0:
        return x

    itemsize = jnp.dtype(x.dtype).itemsize
    block_bytes, vmem_limit = _device_tuning()
    # Sublane-packing multiple: 8 (f32), 16 (bf16/f16), 32 (int8/fp8).
    sub = max(8, 32 // itemsize)

    cost = pl.CostEstimate(
        flops=5 * size,
        transcendentals=0,
        bytes_accessed=2 * size * itemsize,
    )
    cparams = pltpu.CompilerParams(
        dimension_semantics=("parallel",),   # lets both v7x TCs take blocks
        vmem_limit_bytes=vmem_limit,
    )

    lanes = None
    for cand in _LANE_CANDIDATES:
        if size % cand == 0:
            lanes = cand
            break

    if lanes is not None:
        # ---- lane-dense 2D path (free reshape of a contiguous tensor) ----
        rows = size // lanes
        x2 = x.reshape(rows, lanes)

        br = max(block_bytes // (lanes * itemsize), 1)
        br = max((br // sub) * sub, sub)
        if br >= rows:
            br = rows                      # full extent is always a legal block dim
        else:
            br = _prefer_divisor(rows, br, sub)
        grid = (pl.cdiv(rows, br),)        # ragged last block (if any) is masked

        out = pl.pallas_call(
            _h_swish_kernel,
            out_shape=jax.ShapeDtypeStruct((rows, lanes), x.dtype),
            grid_spec=pltpu.PrefetchScalarGridSpec(
                num_scalar_prefetch=0,
                grid=grid,
                in_specs=[pl.BlockSpec((br, lanes), lambda i: (i, 0))],
                out_specs=pl.BlockSpec((br, lanes), lambda i: (i, 0)),
            ),
            compiler_params=cparams,
            cost_estimate=cost,
        )(x2)
        return out.reshape(orig_shape)

    # ---- ragged fallback: flat 1D, lane-dense chunks, masked tail block ----
    x1 = x.reshape(size)
    unit = sub * 128                        # dense (sublane x lane) element unit
    chunk = max(block_bytes // itemsize, unit)
    chunk = (chunk // unit) * unit
    if chunk >= size:
        chunk = size                        # full extent is always legal
    grid = (pl.cdiv(size, chunk),)

    out = pl.pallas_call(
        _h_swish_kernel,
        out_shape=jax.ShapeDtypeStruct((size,), x.dtype),
        grid_spec=pltpu.PrefetchScalarGridSpec(
            num_scalar_prefetch=0,
            grid=grid,
            in_specs=[pl.BlockSpec((chunk,), lambda i: (i,))],
            out_specs=pl.BlockSpec((chunk,), lambda i: (i,)),
        ),
        compiler_params=cparams,
        cost_estimate=cost,
    )(x1)
    return out.reshape(orig_shape)


def h_swish_ref(x):
    xf = x.astype(jnp.float32)
    return (xf * jnp.clip(xf + 3.0, 0.0, 6.0) / 6.0).astype(x.dtype)


if __name__ == "__main__":
    key = jax.random.PRNGKey(0)

    # NCHW, small shape consistent with the PyTorch module's usage.
    x = jax.random.normal(key, (2, 4, 16, 16), dtype=jnp.float32) * 4.0
    y = jax.block_until_ready(h_swish(x))
    y_ref = h_swish_ref(x)
    assert y.shape == x.shape and y.dtype == x.dtype
    assert jnp.allclose(y, y_ref, atol=1e-5, rtol=1e-5), "mismatch vs reference"

    # Realistic MobileNetV3-style activation: lane-dense 2D path, lanes=1024.
    x_big = jax.random.normal(jax.random.PRNGKey(2), (1, 3, 224, 224), jnp.float32) * 4.0
    assert jnp.allclose(h_swish(x_big), h_swish_ref(x_big), atol=1e-5, rtol=1e-5), \
        "mismatch vs reference (224x224)"

    # Odd shape (945 elements): exercises the flat-1D ragged fallback.
    x_odd = jax.random.normal(jax.random.PRNGKey(1), (3, 5, 7, 9), jnp.float32) * 4.0
    assert jnp.allclose(h_swish(x_odd), h_swish_ref(x_odd), atol=1e-5, rtol=1e-5), \
        "mismatch vs reference (odd shape)"

    # bf16 I/O (the only >1.2x lever for an HBM-bound op); looser tolerance
    # since the kernel computes in bf16 while the reference computes in f32.
    x_bf = (jax.random.normal(jax.random.PRNGKey(3), (2, 4, 16, 16), jnp.float32)
            * 4.0).astype(jnp.bfloat16)
    y_bf = jax.block_until_ready(h_swish(x_bf))
    assert y_bf.dtype == jnp.bfloat16
    assert jnp.allclose(y_bf.astype(jnp.float32),
                        h_swish_ref(x_bf).astype(jnp.float32),
                        atol=2e-2, rtol=5e-2), "mismatch vs reference (bf16)"

    print("KERNEL_OK")
</pallas_src>

<mosaic_0001>
module attributes {stable_mosaic.version = 11 : i64} {
  func.func @_h_swish_kernel(%arg0: i32, %arg1: memref<1x2048xf32, #tpu.memory_space<vmem>>, %arg2: memref<1x2048xf32, #tpu.memory_space<vmem>>) attributes {dimension_semantics = [#tpu.dimension_semantics<parallel>], iteration_bounds = array<i64: 1>, scalar_prefetch = 0 : i64, scratch_operands = 0 : i64, tpu.core_type = #tpu.core_type<tc>, window_params = [{transform_indices = @transform_0, window_bounds = array<i64: 1, 2048>}, {transform_indices = @transform_1, window_bounds = array<i64: 1, 2048>}]} {
    %c0 = arith.constant 0 : index
    %c0_0 = arith.constant 0 : index
    %0 = vector.load %arg1[%c0, %c0_0] : memref<1x2048xf32, #tpu.memory_space<vmem>>, vector<1x2048xf32>
    %cst = arith.constant 3.000000e+00 : f32
    %1 = vector.broadcast %cst : f32 to vector<1x2048xf32>
    %2 = arith.addf %0, %1 : vector<1x2048xf32>
    %cst_1 = arith.constant 0.000000e+00 : f32
    %cst_2 = arith.constant 6.000000e+00 : f32
    %3 = vector.broadcast %cst_1 : f32 to vector<1x2048xf32>
    %4 = arith.maximumf %3, %2 : vector<1x2048xf32>
    %5 = vector.broadcast %cst_2 : f32 to vector<1x2048xf32>
    %6 = arith.minimumf %5, %4 : vector<1x2048xf32>
    %cst_3 = arith.constant 6.000000e+00 : f32
    %7 = vector.broadcast %cst_3 : f32 to vector<1x2048xf32>
    %8 = arith.divf %6, %7 : vector<1x2048xf32>
    %9 = arith.mulf %0, %8 : vector<1x2048xf32>
    %c0_4 = arith.constant 0 : index
    %c0_5 = arith.constant 0 : index
    %10 = vector.load %arg2[%c0_4, %c0_5] : memref<1x2048xf32, #tpu.memory_space<vmem>>, vector<1x2048xf32>
    tpu.vector_store %arg2[%c0_4, %c0_5], %9 {strides = array<i32>} : memref<1x2048xf32, #tpu.memory_space<vmem>>, vector<1x2048xf32>,
    return
  }
  func.func @transform_0(%arg0: i32) -> (i32, i32) {
    %c0_i32 = arith.constant 0 : i32
    %c0_i32_0 = arith.constant 0 : i32
    return %arg0, %c0_i32 : i32, i32
  }
  func.func @transform_1(%arg0: i32) -> (i32, i32) {
    %c0_i32 = arith.constant 0 : i32
    %c0_i32_0 = arith.constant 0 : i32
    return %arg0, %c0_i32 : i32, i32
  }
}

</mosaic_0001>

<llo_original>
// kernel: tpu_custom_call.1
$region0: #{tpu_custom_call.1}
  #allocation0 [shape = 'u32[]', space=smem, size = 0x4, offset = 0x4, fixed_abs, tag = 'smem constant byte address 0x4 - core index']
  #allocation1 [shape = 'u32[144,128]{1,0:T(1,128)}', space=vmem, size = 0x12000, scoped, tag = 'internal scratch']
  %s0 = inlined_call_operand.hbm [shape: f32[1,2048], index: 0, kind: input, shape index: {}]
  %s1 = inlined_call_operand.hbm [shape: f32[1,2048], index: 1, kind: output, shape index: {}]
  %s2 = sld [smem:[#allocation0]]
  $region18: #{tpu_custom_call.1} parent=0
    _
  %s4 = ssub.s32 1, %s2
  %s5 = scalar_select 0, %s4, %s2
  $region1: #{tpu_custom_call.1} parent=0
    #allocation2 [shape = 'u8[8192]{0}', space=vmem, size = 0x2000, scoped, tag = 'input window, operand 0, single buffered']
    #allocation3 [shape = 's32[1]{0}', space=sflag, size = 0x4, scoped, tag = 'scoped memory for tpu_custom_call.1']
    #allocation4 [shape = 's32[1]{0}', space=sflag, size = 0x4, scoped, tag = 'scoped memory for tpu_custom_call.1']
    #allocation5 [shape = 'u8[8192]{0}', space=vmem, size = 0x2000, scoped, tag = 'output window, operand 0, single buffered']
    %6 = vsyncpa [#allocation3], 0
    %7 = vsyncpa [#allocation4], 0
    // Predicated region
    $region2: #{tpu_custom_call.1} parent=1 // pred_check
      _
    $region3: #{tpu_custom_call.1} parent=1 // pred_check_branch
      %9 = sbr.rel (0) target = $region5
    $region4: #{tpu_custom_call.1} parent=1 // pred_region
      %s11 = ssub.s32 256, 256
      %12 = vsyncadd [#allocation3], %s11
      %s14 = sshll.u32 [#allocation2], 4
      %s15 = int_to_ptr.vmem [resolvable:$true] %s14
      %17 = dma.hbm_to_vmem [thread:$0]  %s0, 256, %s15, [#allocation3]
    $region5: #{tpu_custom_call.1} parent=1 // pred_fallthru
      _
    // Predicated region
    $region6: #{tpu_custom_call.1} parent=1 // pred_check
      _
    $region7: #{tpu_custom_call.1} parent=1 // pred_check_branch
      %19 = sbr.rel (0) target = $region9
    $region8: #{tpu_custom_call.1} parent=1 // pred_region
      %20 = dma.done [#allocation3], 256
    $region9: #{tpu_custom_call.1} parent=1 // pred_fallthru
      _
    %v21 = vld [vmem:[#allocation2] sm:$0xff]
    %v22 = vld [vmem:[#allocation2 + $0x8] sm:$0xff]
    %v23 = vadd.f32 %v21, 3.0
    %v24 = vadd.f32 %v22, 3.0
    %v25 = vmax.f32 %v23, 0.0
    %v26 = vmax.f32 %v24, 0.0
    %v27 = vmin.f32 %v25, 6.0
    %v28 = vmin.f32 %v26, 6.0
    %v29 = vrcp.pop 6.0
    %v30 = vmul.f32 %v27, %v29
    %v31 = vmul.f32 %v28, %v29
    %v32 = vmul.f32 %v21, %v30
    %v33 = vmul.f32 %v22, %v31
    %34 = vst [vmem:[#allocation5] sm:$0xff] %v32
    %35 = vst [vmem:[#allocation5 + $0x8] sm:$0xff] %v33
    // Predicated region
    $region10: #{tpu_custom_call.1} parent=1 // pred_check
      _
    $region11: #{tpu_custom_call.1} parent=1 // pred_check_branch
      %37 = sbr.rel (0) target = $region13
    $region12: #{tpu_custom_call.1} parent=1 // pred_region
      %s39 = ssub.s32 256, 256
      %40 = vsyncadd [#allocation4], %s39
      %s42 = sshll.u32 [#allocation5], 4
      %s43 = int_to_ptr.vmem [resolvable:$true] %s42
      %45 = dma.vmem_to_hbm [thread:$0]  %s43, 256, %s1, [#allocation4]
    $region13: #{tpu_custom_call.1} parent=1 // pred_fallthru
      _
    // Predicated region
    $region14: #{tpu_custom_call.1} parent=1 // pred_check
      _
    $region15: #{tpu_custom_call.1} parent=1 // pred_check_branch
      %47 = sbr.rel (0) target = $region17
    $region16: #{tpu_custom_call.1} parent=1 // pred_region
      %48 = dma.done [#allocation4], 256
    $region17: #{tpu_custom_call.1} parent=1 // pred_fallthru
      _
    %49 = vsyncpa [#allocation3], 1
    %50 = vsyncpa [#allocation4], 1

</llo_original>
